<compile_context>
chip_gen: v6e
topology: v6e:2x2x1
jax: 0.10.0
libtpu: 0.0.40
codegen_flags: <defaults>
</compile_context>

<pallas_src>
import functools

import jax
import jax.numpy as jnp
from jax import lax
from jax.experimental import pallas as pl
from jax.experimental.pallas import tpu as pltpu


def _round_up(n, m):
    return ((n + m - 1) // m) * m


def _mha_kernel(x_ref, wqkv_ref, bqkv_ref, wp_ref, bp_ref, o_ref, *,
                num_heads, head_size):
    D = num_heads * head_size
    T = x_ref.shape[1]

    x = x_ref[0]                                                       # (T, E) bf16

    # Fused QKV projection for all heads: one lane-wide MXU matmul.
    qkv = jnp.dot(x, wqkv_ref[...],
                  preferred_element_type=jnp.float32) + bqkv_ref[...]  # (T, QKVp) f32

    # Causal (lower-triangular) mask, built once and reused by every head.
    row = lax.broadcasted_iota(jnp.int32, (T, T), 0)
    col = lax.broadcasted_iota(jnp.int32, (T, T), 1)
    causal = col <= row

    scale = head_size ** (-0.5)

    head_outs = []
    for h in range(num_heads):
        q = qkv[:, h * head_size:(h + 1) * head_size]                   # (T, H)
        # scale folded into k: (T,H) mults instead of scaling the (T,T) scores
        k = qkv[:, D + h * head_size:D + (h + 1) * head_size] * scale   # (T, H)
        v = qkv[:, 2 * D + h * head_size:2 * D + (h + 1) * head_size]   # (T, H)

        # Faithful to the reference quirk: wei = key @ query^T.  Contract the
        # feature dim of BOTH operands -> no explicit transpose copy.
        wei = lax.dot_general(
            k.astype(jnp.bfloat16), q.astype(jnp.bfloat16),
            (((1,), (1,)), ((), ())),
            preferred_element_type=jnp.float32)                         # (T, T)

        wei = jnp.where(causal, wei, -jnp.inf)

        # Numerically stable softmax; denominator via EUP approx reciprocal.
        wei_max = jnp.max(wei, axis=-1, keepdims=True)
        e = jnp.exp(wei - wei_max)
        denom = jnp.sum(e, axis=-1, keepdims=True)
        p = e * pl.reciprocal(denom, approx=True)

        # dropout on attention weights: identity (eval mode)
        head_outs.append(
            jnp.dot(p.astype(jnp.bfloat16), v.astype(jnp.bfloat16),
                    preferred_element_type=jnp.float32))                # (T, H)

    # Head concat + single output-projection dot (accumulated inside the MXU).
    heads_cat = jnp.concatenate(head_outs, axis=-1)                     # (T, D)
    out = jnp.dot(heads_cat.astype(jnp.bfloat16), wp_ref[...],
                  preferred_element_type=jnp.float32) + bp_ref[...]     # (T, Dp)

    o_ref[0] = out.astype(o_ref.dtype)


def multi_head_attention(x, wq, wk, wv, bq, bk, bv, wp, bp):
    """x: (B, T, E).  wq/wk/wv: (nh, E, H).  bq/bk/bv: (nh, 1, H).
    wp: (nh, H, D).  bp: (1, 1, D).  Returns (B, T, D) with D = nh * H."""
    B, T, E = x.shape
    nh, _, H = wq.shape
    D = nh * H

    # ---- wrapper-side layout plumbing (done once, outside the kernel) ----
    def heads_to_mat(w):   # (nh, E, H) -> (E, nh*H), head-major columns
        return jnp.transpose(w, (1, 0, 2)).reshape(E, nh * H)

    def heads_to_bias(b):  # (nh, 1, H) -> (1, nh*H)
        return jnp.transpose(b, (1, 0, 2)).reshape(1, nh * H)

    w_qkv = jnp.concatenate(
        [heads_to_mat(wq), heads_to_mat(wk), heads_to_mat(wv)], axis=-1)   # (E, 3D)
    b_qkv = jnp.concatenate(
        [heads_to_bias(bq), heads_to_bias(bk), heads_to_bias(bv)], axis=-1)  # (1, 3D)

    wp_full = wp.reshape(D, D)            # matches torch.cat head-major order
    bp_full = bp.reshape(1, D)

    # Pad lane (last) dims to multiples of 128 -> lane-dense MXU + unmasked vst.
    QKVp = _round_up(3 * D, 128)
    Dp = _round_up(D, 128)
    w_qkv = jnp.pad(w_qkv, ((0, 0), (0, QKVp - 3 * D)))
    b_qkv = jnp.pad(b_qkv, ((0, 0), (0, QKVp - 3 * D)))
    wp_full = jnp.pad(wp_full, ((0, 0), (0, Dp - D)))
    bp_full = jnp.pad(bp_full, ((0, 0), (0, Dp - D)))

    # bf16 MXU operands (biases stay f32 and are added to f32 accumulators).
    x_bf = x.astype(jnp.bfloat16)
    w_qkv = w_qkv.astype(jnp.bfloat16)
    wp_full = wp_full.astype(jnp.bfloat16)

    kernel = functools.partial(_mha_kernel, num_heads=nh, head_size=H)

    out = pl.pallas_call(
        kernel,
        out_shape=jax.ShapeDtypeStruct((B, T, Dp), jnp.float32),
        grid=(B,),
        in_specs=[
            pl.BlockSpec((1, T, E), lambda b: (b, 0, 0)),   # x (per-batch tile)
            pl.BlockSpec((E, QKVp), lambda b: (0, 0)),      # fused QKV weight (constant block)
            pl.BlockSpec((1, QKVp), lambda b: (0, 0)),      # fused QKV bias
            pl.BlockSpec((D, Dp), lambda b: (0, 0)),        # projection weight
            pl.BlockSpec((1, Dp), lambda b: (0, 0)),        # projection bias
        ],
        out_specs=pl.BlockSpec((1, T, Dp), lambda b: (b, 0, 0)),
        compiler_params=pltpu.CompilerParams(
            dimension_semantics=("parallel",)),
    )(x_bf, w_qkv, b_qkv, wp_full, bp_full)

    return out[:, :, :D]


def reference(x, wq, wk, wv, bq, bk, bv, wp, bp):
    """Pure-JAX f32 reference mirroring the PyTorch forward (eval-mode dropout)."""
    B, T, E = x.shape
    nh, _, H = wq.shape
    heads = []
    for h in range(nh):
        q = x @ wq[h] + bq[h]
        k = x @ wk[h] + bk[h]
        v = x @ wv[h] + bv[h]
        wei = (k @ jnp.swapaxes(q, -1, -2)) * (H ** -0.5)
        mask = jnp.tril(jnp.ones((T, T)))
        wei = jnp.where(mask == 0, -jnp.inf, wei)
        wei = jax.nn.softmax(wei, axis=-1)
        heads.append(wei @ v)
    out = jnp.concatenate(heads, axis=-1)
    wp_full = wp.reshape(nh * H, nh * H)
    return out @ wp_full + bp[0]


if __name__ == "__main__":
    # Small shapes consistent with the module's forward:
    # batch=2, seq=8 (<= context_size), embedding_dim=32, num_heads=4, head_size=8
    B, T, E, NH, H = 2, 8, 32, 4, 8
    D = NH * H

    key = jax.random.PRNGKey(0)
    ks = jax.random.split(key, 9)
    x = jax.random.normal(ks[0], (B, T, E), dtype=jnp.float32)
    wq = jax.random.normal(ks[1], (NH, E, H), dtype=jnp.float32) * 0.05
    wk = jax.random.normal(ks[2], (NH, E, H), dtype=jnp.float32) * 0.05
    wv = jax.random.normal(ks[3], (NH, E, H), dtype=jnp.float32) * 0.05
    bq = jax.random.normal(ks[4], (NH, 1, H), dtype=jnp.float32) * 0.01
    bk = jax.random.normal(ks[5], (NH, 1, H), dtype=jnp.float32) * 0.01
    bv = jax.random.normal(ks[6], (NH, 1, H), dtype=jnp.float32) * 0.01
    wp = jax.random.normal(ks[7], (NH, H, D), dtype=jnp.float32) * 0.05
    bp = jax.random.normal(ks[8], (1, 1, D), dtype=jnp.float32) * 0.01

    out = multi_head_attention(x, wq, wk, wv, bq, bk, bv, wp, bp)
    out = jax.block_until_ready(out)

    ref = reference(x, wq, wk, wv, bq, bk, bv, wp, bp)
    assert out.shape == (B, T, D)
    # bf16 MXU operands + approx reciprocal -> loosened tolerance vs f32 ref.
    assert jnp.allclose(out, ref, atol=2e-2, rtol=2e-2), (
        float(jnp.max(jnp.abs(out - ref))))

    print("KERNEL_OK")
</pallas_src>

<mosaic_0001>
module attributes {stable_mosaic.version = 11 : i64} {
  func.func @_mha_kernel(%arg0: i32, %arg1: memref<1x8x32xbf16, #tpu.memory_space<vmem>>, %arg2: memref<32x128xbf16, #tpu.memory_space<vmem>>, %arg3: memref<1x128xf32, #tpu.memory_space<vmem>>, %arg4: memref<32x128xbf16, #tpu.memory_space<vmem>>, %arg5: memref<1x128xf32, #tpu.memory_space<vmem>>, %arg6: memref<1x8x128xf32, #tpu.memory_space<vmem>>) attributes {dimension_semantics = [#tpu.dimension_semantics<parallel>], iteration_bounds = array<i64: 2>, scalar_prefetch = 0 : i64, scratch_operands = 0 : i64, tpu.core_type = #tpu.core_type<tc>, window_params = [{transform_indices = @transform_0, window_bounds = array<i64: 1, 8, 32>}, {pipeline_mode = #tpu.pipeline_mode<synchronous>, transform_indices = @transform_1, window_bounds = array<i64: 32, 128>}, {pipeline_mode = #tpu.pipeline_mode<synchronous>, transform_indices = @transform_2, window_bounds = array<i64: 1, 128>}, {pipeline_mode = #tpu.pipeline_mode<synchronous>, transform_indices = @transform_3, window_bounds = array<i64: 32, 128>}, {pipeline_mode = #tpu.pipeline_mode<synchronous>, transform_indices = @transform_4, window_bounds = array<i64: 1, 128>}, {transform_indices = @transform_5, window_bounds = array<i64: 1, 8, 128>}]} {
    %c0 = arith.constant 0 : index
    %c0_0 = arith.constant 0 : index
    %c0_1 = arith.constant 0 : index
    %0 = vector.load %arg1[%c0, %c0_0, %c0_1] : memref<1x8x32xbf16, #tpu.memory_space<vmem>>, vector<1x8x32xbf16>
    %1 = vector.shape_cast %0 : vector<1x8x32xbf16> to vector<8x32xbf16>
    %c0_2 = arith.constant 0 : index
    %c0_3 = arith.constant 0 : index
    %2 = vector.load %arg2[%c0_2, %c0_3] : memref<32x128xbf16, #tpu.memory_space<vmem>>, vector<32x128xbf16>
    %cst = arith.constant dense<0.000000e+00> : vector<8x128xf32>
    %3 = tpu.matmul %1, %2, %cst {dimension_numbers = #tpu.dot_dimension_numbers<[1], [0], [0], [1], [0, 0, 1, 1], [], []>} : vector<8x32xbf16>, vector<32x128xbf16>, vector<8x128xf32> -> vector<8x128xf32>
    %c0_4 = arith.constant 0 : index
    %c0_5 = arith.constant 0 : index
    %4 = vector.load %arg3[%c0_4, %c0_5] : memref<1x128xf32, #tpu.memory_space<vmem>>, vector<1x128xf32>
    %5 = vector.broadcast %4 : vector<1x128xf32> to vector<8x128xf32>
    %6 = arith.addf %3, %5 : vector<8x128xf32>
    %7 = tpu.iota {dimensions = array<i32: 0>} : vector<8x8xi32>
    %8 = tpu.iota {dimensions = array<i32: 1>} : vector<8x8xi32>
    %9 = arith.cmpi sle, %8, %7 : vector<8x8xi32>
    %10 = vector.extract_strided_slice %6 {offsets = [0, 0], sizes = [8, 8], strides = [1, 1]} : vector<8x128xf32> to vector<8x8xf32>
    %11 = vector.extract_strided_slice %6 {offsets = [0, 32], sizes = [8, 8], strides = [1, 1]} : vector<8x128xf32> to vector<8x8xf32>
    %cst_6 = arith.constant 0.353553385 : f32
    %12 = vector.broadcast %cst_6 : f32 to vector<8x8xf32>
    %13 = arith.mulf %11, %12 : vector<8x8xf32>
    %14 = vector.extract_strided_slice %6 {offsets = [0, 64], sizes = [8, 8], strides = [1, 1]} : vector<8x128xf32> to vector<8x8xf32>
    %15 = arith.truncf %13 : vector<8x8xf32> to vector<8x8xbf16>
    %16 = arith.truncf %10 : vector<8x8xf32> to vector<8x8xbf16>
    %cst_7 = arith.constant dense<0.000000e+00> : vector<8x8xf32>
    %17 = tpu.matmul %15, %16, %cst_7 {dimension_numbers = #tpu.dot_dimension_numbers<[1], [1], [0], [0], [0, 0, 1, 0], [], []>} : vector<8x8xbf16>, vector<8x8xbf16>, vector<8x8xf32> -> vector<8x8xf32>
    %cst_8 = arith.constant 0xFF800000 : f32
    %18 = vector.broadcast %cst_8 : f32 to vector<8x8xf32>
    %19 = arith.select %9, %17, %18 : vector<8x8xi1>, vector<8x8xf32>
    %cst_9 = arith.constant dense<0xFF800000> : vector<8xf32>
    %20 = vector.multi_reduction <maximumf>, %19, %cst_9 [1] : vector<8x8xf32> to vector<8xf32>
    %21 = vector.shape_cast %20 : vector<8xf32> to vector<8x1xf32>
    %22 = vector.broadcast %21 : vector<8x1xf32> to vector<8x8xf32>
    %23 = arith.subf %19, %22 : vector<8x8xf32>
    %24 = math.exp %23 : vector<8x8xf32>
    %cst_10 = arith.constant dense<0.000000e+00> : vector<8xf32>
    %25 = vector.multi_reduction <add>, %24, %cst_10 [1] : vector<8x8xf32> to vector<8xf32>
    %26 = vector.shape_cast %25 : vector<8xf32> to vector<8x1xf32>
    %27 = tpu.reciprocal %26 {approx = true} : vector<8x1xf32> -> vector<8x1xf32>
    %28 = vector.broadcast %27 : vector<8x1xf32> to vector<8x8xf32>
    %29 = arith.mulf %24, %28 : vector<8x8xf32>
    %30 = arith.truncf %29 : vector<8x8xf32> to vector<8x8xbf16>
    %31 = arith.truncf %14 : vector<8x8xf32> to vector<8x8xbf16>
    %cst_11 = arith.constant dense<0.000000e+00> : vector<8x8xf32>
    %32 = tpu.matmul %30, %31, %cst_11 {dimension_numbers = #tpu.dot_dimension_numbers<[1], [0], [0], [1], [0, 0, 1, 1], [], []>} : vector<8x8xbf16>, vector<8x8xbf16>, vector<8x8xf32> -> vector<8x8xf32>
    %33 = vector.extract_strided_slice %6 {offsets = [0, 8], sizes = [8, 8], strides = [1, 1]} : vector<8x128xf32> to vector<8x8xf32>
    %34 = vector.extract_strided_slice %6 {offsets = [0, 40], sizes = [8, 8], strides = [1, 1]} : vector<8x128xf32> to vector<8x8xf32>
    %cst_12 = arith.constant 0.353553385 : f32
    %35 = vector.broadcast %cst_12 : f32 to vector<8x8xf32>
    %36 = arith.mulf %34, %35 : vector<8x8xf32>
    %37 = vector.extract_strided_slice %6 {offsets = [0, 72], sizes = [8, 8], strides = [1, 1]} : vector<8x128xf32> to vector<8x8xf32>
    %38 = arith.truncf %36 : vector<8x8xf32> to vector<8x8xbf16>
    %39 = arith.truncf %33 : vector<8x8xf32> to vector<8x8xbf16>
    %cst_13 = arith.constant dense<0.000000e+00> : vector<8x8xf32>
    %40 = tpu.matmul %38, %39, %cst_13 {dimension_numbers = #tpu.dot_dimension_numbers<[1], [1], [0], [0], [0, 0, 1, 0], [], []>} : vector<8x8xbf16>, vector<8x8xbf16>, vector<8x8xf32> -> vector<8x8xf32>
    %cst_14 = arith.constant 0xFF800000 : f32
    %41 = vector.broadcast %cst_14 : f32 to vector<8x8xf32>
    %42 = arith.select %9, %40, %41 : vector<8x8xi1>, vector<8x8xf32>
    %cst_15 = arith.constant dense<0xFF800000> : vector<8xf32>
    %43 = vector.multi_reduction <maximumf>, %42, %cst_15 [1] : vector<8x8xf32> to vector<8xf32>
    %44 = vector.shape_cast %43 : vector<8xf32> to vector<8x1xf32>
    %45 = vector.broadcast %44 : vector<8x1xf32> to vector<8x8xf32>
    %46 = arith.subf %42, %45 : vector<8x8xf32>
    %47 = math.exp %46 : vector<8x8xf32>
    %cst_16 = arith.constant dense<0.000000e+00> : vector<8xf32>
    %48 = vector.multi_reduction <add>, %47, %cst_16 [1] : vector<8x8xf32> to vector<8xf32>
    %49 = vector.shape_cast %48 : vector<8xf32> to vector<8x1xf32>
    %50 = tpu.reciprocal %49 {approx = true} : vector<8x1xf32> -> vector<8x1xf32>
    %51 = vector.broadcast %50 : vector<8x1xf32> to vector<8x8xf32>
    %52 = arith.mulf %47, %51 : vector<8x8xf32>
    %53 = arith.truncf %52 : vector<8x8xf32> to vector<8x8xbf16>
    %54 = arith.truncf %37 : vector<8x8xf32> to vector<8x8xbf16>
    %cst_17 = arith.constant dense<0.000000e+00> : vector<8x8xf32>
    %55 = tpu.matmul %53, %54, %cst_17 {dimension_numbers = #tpu.dot_dimension_numbers<[1], [0], [0], [1], [0, 0, 1, 1], [], []>} : vector<8x8xbf16>, vector<8x8xbf16>, vector<8x8xf32> -> vector<8x8xf32>
    %56 = vector.extract_strided_slice %6 {offsets = [0, 16], sizes = [8, 8], strides = [1, 1]} : vector<8x128xf32> to vector<8x8xf32>
    %57 = vector.extract_strided_slice %6 {offsets = [0, 48], sizes = [8, 8], strides = [1, 1]} : vector<8x128xf32> to vector<8x8xf32>
    %cst_18 = arith.constant 0.353553385 : f32
    %58 = vector.broadcast %cst_18 : f32 to vector<8x8xf32>
    %59 = arith.mulf %57, %58 : vector<8x8xf32>
    %60 = vector.extract_strided_slice %6 {offsets = [0, 80], sizes = [8, 8], strides = [1, 1]} : vector<8x128xf32> to vector<8x8xf32>
    %61 = arith.truncf %59 : vector<8x8xf32> to vector<8x8xbf16>
    %62 = arith.truncf %56 : vector<8x8xf32> to vector<8x8xbf16>
    %cst_19 = arith.constant dense<0.000000e+00> : vector<8x8xf32>
    %63 = tpu.matmul %61, %62, %cst_19 {dimension_numbers = #tpu.dot_dimension_numbers<[1], [1], [0], [0], [0, 0, 1, 0], [], []>} : vector<8x8xbf16>, vector<8x8xbf16>, vector<8x8xf32> -> vector<8x8xf32>
    %cst_20 = arith.constant 0xFF800000 : f32
    %64 = vector.broadcast %cst_20 : f32 to vector<8x8xf32>
    %65 = arith.select %9, %63, %64 : vector<8x8xi1>, vector<8x8xf32>
    %cst_21 = arith.constant dense<0xFF800000> : vector<8xf32>
    %66 = vector.multi_reduction <maximumf>, %65, %cst_21 [1] : vector<8x8xf32> to vector<8xf32>
    %67 = vector.shape_cast %66 : vector<8xf32> to vector<8x1xf32>
    %68 = vector.broadcast %67 : vector<8x1xf32> to vector<8x8xf32>
    %69 = arith.subf %65, %68 : vector<8x8xf32>
    %70 = math.exp %69 : vector<8x8xf32>
    %cst_22 = arith.constant dense<0.000000e+00> : vector<8xf32>
    %71 = vector.multi_reduction <add>, %70, %cst_22 [1] : vector<8x8xf32> to vector<8xf32>
    %72 = vector.shape_cast %71 : vector<8xf32> to vector<8x1xf32>
    %73 = tpu.reciprocal %72 {approx = true} : vector<8x1xf32> -> vector<8x1xf32>
    %74 = vector.broadcast %73 : vector<8x1xf32> to vector<8x8xf32>
    %75 = arith.mulf %70, %74 : vector<8x8xf32>
    %76 = arith.truncf %75 : vector<8x8xf32> to vector<8x8xbf16>
    %77 = arith.truncf %60 : vector<8x8xf32> to vector<8x8xbf16>
    %cst_23 = arith.constant dense<0.000000e+00> : vector<8x8xf32>
    %78 = tpu.matmul %76, %77, %cst_23 {dimension_numbers = #tpu.dot_dimension_numbers<[1], [0], [0], [1], [0, 0, 1, 1], [], []>} : vector<8x8xbf16>, vector<8x8xbf16>, vector<8x8xf32> -> vector<8x8xf32>
    %79 = vector.extract_strided_slice %6 {offsets = [0, 24], sizes = [8, 8], strides = [1, 1]} : vector<8x128xf32> to vector<8x8xf32>
    %80 = vector.extract_strided_slice %6 {offsets = [0, 56], sizes = [8, 8], strides = [1, 1]} : vector<8x128xf32> to vector<8x8xf32>
    %cst_24 = arith.constant 0.353553385 : f32
    %81 = vector.broadcast %cst_24 : f32 to vector<8x8xf32>
    %82 = arith.mulf %80, %81 : vector<8x8xf32>
    %83 = vector.extract_strided_slice %6 {offsets = [0, 88], sizes = [8, 8], strides = [1, 1]} : vector<8x128xf32> to vector<8x8xf32>
    %84 = arith.truncf %82 : vector<8x8xf32> to vector<8x8xbf16>
    %85 = arith.truncf %79 : vector<8x8xf32> to vector<8x8xbf16>
    %cst_25 = arith.constant dense<0.000000e+00> : vector<8x8xf32>
    %86 = tpu.matmul %84, %85, %cst_25 {dimension_numbers = #tpu.dot_dimension_numbers<[1], [1], [0], [0], [0, 0, 1, 0], [], []>} : vector<8x8xbf16>, vector<8x8xbf16>, vector<8x8xf32> -> vector<8x8xf32>
    %cst_26 = arith.constant 0xFF800000 : f32
    %87 = vector.broadcast %cst_26 : f32 to vector<8x8xf32>
    %88 = arith.select %9, %86, %87 : vector<8x8xi1>, vector<8x8xf32>
    %cst_27 = arith.constant dense<0xFF800000> : vector<8xf32>
    %89 = vector.multi_reduction <maximumf>, %88, %cst_27 [1] : vector<8x8xf32> to vector<8xf32>
    %90 = vector.shape_cast %89 : vector<8xf32> to vector<8x1xf32>
    %91 = vector.broadcast %90 : vector<8x1xf32> to vector<8x8xf32>
    %92 = arith.subf %88, %91 : vector<8x8xf32>
    %93 = math.exp %92 : vector<8x8xf32>
    %cst_28 = arith.constant dense<0.000000e+00> : vector<8xf32>
    %94 = vector.multi_reduction <add>, %93, %cst_28 [1] : vector<8x8xf32> to vector<8xf32>
    %95 = vector.shape_cast %94 : vector<8xf32> to vector<8x1xf32>
    %96 = tpu.reciprocal %95 {approx = true} : vector<8x1xf32> -> vector<8x1xf32>
    %97 = vector.broadcast %96 : vector<8x1xf32> to vector<8x8xf32>
    %98 = arith.mulf %93, %97 : vector<8x8xf32>
    %99 = arith.truncf %98 : vector<8x8xf32> to vector<8x8xbf16>
    %100 = arith.truncf %83 : vector<8x8xf32> to vector<8x8xbf16>
    %cst_29 = arith.constant dense<0.000000e+00> : vector<8x8xf32>
    %101 = tpu.matmul %99, %100, %cst_29 {dimension_numbers = #tpu.dot_dimension_numbers<[1], [0], [0], [1], [0, 0, 1, 1], [], []>} : vector<8x8xbf16>, vector<8x8xbf16>, vector<8x8xf32> -> vector<8x8xf32>
    %102 = tpu.concatenate %32, %55, %78, %101 in 1 : vector<8x8xf32>, vector<8x8xf32>, vector<8x8xf32>, vector<8x8xf32> -> vector<8x32xf32>
    %103 = arith.truncf %102 : vector<8x32xf32> to vector<8x32xbf16>
    %c0_30 = arith.constant 0 : index
    %c0_31 = arith.constant 0 : index
    %104 = vector.load %arg4[%c0_30, %c0_31] : memref<32x128xbf16, #tpu.memory_space<vmem>>, vector<32x128xbf16>
    %cst_32 = arith.constant dense<0.000000e+00> : vector<8x128xf32>
    %105 = tpu.matmul %103, %104, %cst_32 {dimension_numbers = #tpu.dot_dimension_numbers<[1], [0], [0], [1], [0, 0, 1, 1], [], []>} : vector<8x32xbf16>, vector<32x128xbf16>, vector<8x128xf32> -> vector<8x128xf32>
    %c0_33 = arith.constant 0 : index
    %c0_34 = arith.constant 0 : index
    %106 = vector.load %arg5[%c0_33, %c0_34] : memref<1x128xf32, #tpu.memory_space<vmem>>, vector<1x128xf32>
    %107 = vector.broadcast %106 : vector<1x128xf32> to vector<8x128xf32>
    %108 = arith.addf %105, %107 : vector<8x128xf32>
    %c0_35 = arith.constant 0 : index
    %c0_36 = arith.constant 0 : index
    %c0_37 = arith.constant 0 : index
    %109 = vector.load %arg6[%c0_35, %c0_36, %c0_37] : memref<1x8x128xf32, #tpu.memory_space<vmem>>, vector<1x8x128xf32>
    %110 = vector.shape_cast %109 : vector<1x8x128xf32> to vector<8x128xf32>
    %111 = vector.shape_cast %108 : vector<8x128xf32> to vector<1x8x128xf32>
    tpu.vector_store %arg6[%c0_35, %c0_36, %c0_37], %111 {strides = array<i32>} : memref<1x8x128xf32, #tpu.memory_space<vmem>>, vector<1x8x128xf32>,
    return
  }
  func.func @transform_0(%arg0: i32) -> (i32, i32, i32) {
    %c0_i32 = arith.constant 0 : i32
    %c0_i32_0 = arith.constant 0 : i32
    %c0_i32_1 = arith.constant 0 : i32
    return %arg0, %c0_i32, %c0_i32_0 : i32, i32, i32
  }
  func.func @transform_1(%arg0: i32) -> (i32, i32) {
    %c0_i32 = arith.constant 0 : i32
    %c0_i32_0 = arith.constant 0 : i32
    %c0_i32_1 = arith.constant 0 : i32
    return %c0_i32, %c0_i32_0 : i32, i32
  }
  func.func @transform_2(%arg0: i32) -> (i32, i32) {
    %c0_i32 = arith.constant 0 : i32
    %c0_i32_0 = arith.constant 0 : i32
    %c0_i32_1 = arith.constant 0 : i32
    return %c0_i32, %c0_i32_0 : i32, i32
  }
  func.func @transform_3(%arg0: i32) -> (i32, i32) {
    %c0_i32 = arith.constant 0 : i32
    %c0_i32_0 = arith.constant 0 : i32
    %c0_i32_1 = arith.constant 0 : i32
    return %c0_i32, %c0_i32_0 : i32, i32
  }
  func.func @transform_4(%arg0: i32) -> (i32, i32) {
    %c0_i32 = arith.constant 0 : i32
    %c0_i32_0 = arith.constant 0 : i32
    %c0_i32_1 = arith.constant 0 : i32
    return %c0_i32, %c0_i32_0 : i32, i32
  }
  func.func @transform_5(%arg0: i32) -> (i32, i32, i32) {
    %c0_i32 = arith.constant 0 : i32
    %c0_i32_0 = arith.constant 0 : i32
    %c0_i32_1 = arith.constant 0 : i32
    return %arg0, %c0_i32, %c0_i32_0 : i32, i32, i32
  }
}

</mosaic_0001>

<llo_original>
// kernel: tpu_custom_call.1
$region0: #{tpu_custom_call.1}
  #allocation0 [shape = 'u32[]', space=smem, size = 0x4, offset = 0x4, fixed_abs, tag = 'smem constant byte address 0x4 - core index']
  #allocation1 [shape = 'u32[144,128]{1,0:T(1,128)}', space=vmem, size = 0x12000, scoped, tag = 'internal scratch']
  %s0 = inlined_call_operand.hbm [shape: bf16[2,8,32], index: 0, kind: input, shape index: {}]
  %s1 = inlined_call_operand.hbm [shape: bf16[32,128], index: 1, kind: input, shape index: {}]
  %s2 = inlined_call_operand.vmem [shape: f32[1,128], index: 2, kind: input, shape index: {}]
  %s3 = inlined_call_operand.hbm [shape: bf16[32,128], index: 3, kind: input, shape index: {}]
  %s4 = inlined_call_operand.vmem [shape: f32[1,128], index: 4, kind: input, shape index: {}]
  %s5 = inlined_call_operand.hbm [shape: f32[2,8,128], index: 5, kind: output, shape index: {}]
  %s6 = sld [smem:[#allocation0]]
  $region65: #{tpu_custom_call.1} parent=0
    _
  %s8 = ssub.s32 1, %s6
  %s9 = scalar_select 0, %s8, %s6
  $region1: #{tpu_custom_call.1} parent=0
    #allocation2 [shape = 'u8[4096]{0}', space=vmem, size = 0x1000, scoped, tag = 'input window, operand 0']
    #allocation3 [shape = 's32[2]{0}', space=sflag, size = 0x8, scoped, tag = 'scoped memory for tpu_custom_call.1']
    #allocation4 [shape = 's32[2]{0}', space=sflag, size = 0x8, scoped, tag = 'scoped memory for tpu_custom_call.1']
    #allocation5 [shape = 'u8[8192]{0}', space=vmem, size = 0x2000, scoped, tag = 'input window, operand 1, single buffered']
    #allocation6 [shape = 's32[1]{0}', space=sflag, size = 0x4, scoped, tag = 'scoped memory for tpu_custom_call.1']
    #allocation7 [shape = 'u8[8192]{0}', space=vmem, size = 0x2000, scoped, tag = 'input window, operand 3, single buffered']
    #allocation8 [shape = 'u8[8192]{0}', space=vmem, size = 0x2000, scoped, tag = 'output window, operand 0']
    %10 = vsyncpa [#allocation3], 0
    %s11 = scalar_lea.sflag [#allocation3], 1
    %12 = vsyncpa %s11, 0
    %13 = vsyncpa [#allocation6], 0
    %14 = vsyncpa [#allocation4], 0
    %s15 = scalar_lea.sflag [#allocation4], 1
    %16 = vsyncpa %s15, 0
    loop: start=0, step=1, limit=4
    $region2: #{tpu_custom_call.1} parent=1 // loop_pre_header
      _
    $region3: #{tpu_custom_call.1} parent=1 // loop_header
      %s18 = sphi 0, %s22
      %p19 = scmp.ge.s32.totalorder %s18, 4
      %s28 = sphi 0, %s30
      %s31 = sphi 0, %s28
      %s32 = sphi 0, %s31
      %s48 = sphi 0, %s32
      %s52 = sphi 0, %s52
      %s54 = sphi 0, %s52
      %s55 = sphi 0, %s54
      %s69 = sphi 0, %s55
      %s73 = sphi 0, %s73
      %s75 = sphi 0, %s73
      %s76 = sphi 0, %s75
      %s90 = sphi 0, %s76
      %s94 = sphi 0, %s94
      %s96 = sphi 0, %s94
      %s97 = sphi 0, %s96
      %s111 = sphi 0, %s97
      %s115 = sphi 0, %s115
      %s117 = sphi 0, %s115
      %s118 = sphi 0, %s117
      %s132 = sphi 0, %s118
      %s138 = sphi 0, %s140
      %s141 = sphi 0, %s138
      %s142 = sphi 0, %s141
      %s158 = sphi 0, %s142
    $region4: #{tpu_custom_call.1} parent=1 // loop_header_branch
      %21 = sbr.rel (%p19) target = $region8
    $region5: #{tpu_custom_call.1} parent=1 // loop_body
      %s23 = ssub.s32 %s18, 1
      %s24 = ssub.s32 %s18, 2
      %s25 = sadd.s32 %s18, 1
      %s26 = ssub.s32 %s18, %s25
      %p27 = scmp.eq.s32.totalorder %s26, 0
      %s29 = sadd.s32 %s28, 1
      %s30 = scalar_select %p27, %s28, %s29
      %p33 = pneg %p27
      %p34 = scmp.eq.s32.totalorder %s18, 1
      %p35 = por %p33, %p34
      %p36 = scmp.ne.s32.totalorder %s28, %s31
      %p37 = scmp.eq.s32.totalorder %s18, 0
      %p38 = por %p36, %p37
      %p39 = scmp.ne.s32.totalorder %s28, %s31
      %p40 = scmp.eq.s32.totalorder %s23, 1
      %p41 = por %p39, %p40
      %p42 = scmp.ne.s32.totalorder %s31, %s32
      %p43 = scmp.eq.s32.totalorder %s23, 0
      %p44 = por %p42, %p43
      %p45 = scmp.ne.s32.totalorder %s31, %s32
      %p46 = scmp.eq.s32.totalorder %s24, 1
      %p47 = por %p45, %p46
      %p49 = scmp.ne.s32.totalorder %s32, %s48
      %p50 = scmp.eq.s32.totalorder %s24, 0
      %p51 = por %p49, %p50
      %s53 = sadd.s32 %s52, 1
      %p56 = scmp.eq.s32.totalorder %s18, 1
      %p57 = scmp.ne.s32.totalorder %s52, %s54
      %p58 = scmp.eq.s32.totalorder %s18, 0
      %p59 = por %p57, %p58
      %p60 = scmp.ne.s32.totalorder %s52, %s54
      %p61 = scmp.eq.s32.totalorder %s23, 1
      %p62 = por %p60, %p61
      %p63 = scmp.ne.s32.totalorder %s54, %s55
      %p64 = scmp.eq.s32.totalorder %s23, 0
      %p65 = por %p63, %p64
      %p66 = scmp.ne.s32.totalorder %s54, %s55
      %p67 = scmp.eq.s32.totalorder %s24, 1
      %p68 = por %p66, %p67
      %p70 = scmp.ne.s32.totalorder %s55, %s69
      %p71 = scmp.eq.s32.totalorder %s24, 0
      %p72 = por %p70, %p71
      %s74 = sadd.s32 %s73, 1
      %p77 = scmp.eq.s32.totalorder %s18, 1
      %p78 = scmp.ne.s32.totalorder %s73, %s75
      %p79 = scmp.eq.s32.totalorder %s18, 0
      %p80 = por %p78, %p79
      %p81 = scmp.ne.s32.totalorder %s73, %s75
      %p82 = scmp.eq.s32.totalorder %s23, 1
      %p83 = por %p81, %p82
      %p84 = scmp.ne.s32.totalorder %s75, %s76
      %p85 = scmp.eq.s32.totalorder %s23, 0
      %p86 = por %p84, %p85
      %p87 = scmp.ne.s32.totalorder %s75, %s76
      %p88 = scmp.eq.s32.totalorder %s24, 1
      %p89 = por %p87, %p88
      %p91 = scmp.ne.s32.totalorder %s76, %s90
      %p92 = scmp.eq.s32.totalorder %s24, 0
      %p93 = por %p91, %p92
      %s95 = sadd.s32 %s94, 1
      %p98 = scmp.eq.s32.totalorder %s18, 1
      %p99 = scmp.ne.s32.totalorder %s94, %s96
      %p100 = scmp.eq.s32.totalorder %s18, 0
      %p101 = por %p99, %p100
      %p102 = scmp.ne.s32.totalorder %s94, %s96
      %p103 = scmp.eq.s32.totalorder %s23, 1
      %p104 = por %p102, %p103
      %p105 = scmp.ne.s32.totalorder %s96, %s97
      %p106 = scmp.eq.s32.totalorder %s23, 0
      %p107 = por %p105, %p106
      %p108 = scmp.ne.s32.totalorder %s96, %s97
      %p109 = scmp.eq.s32.totalorder %s24, 1
      %p110 = por %p108, %p109
      %p112 = scmp.ne.s32.totalorder %s97, %s111
      %p113 = scmp.eq.s32.totalorder %s24, 0
      %p114 = por %p112, %p113
      %s116 = sadd.s32 %s115, 1
      %p119 = scmp.eq.s32.totalorder %s18, 1
      %p120 = scmp.ne.s32.totalorder %s115, %s117
      %p121 = scmp.eq.s32.totalorder %s18, 0
      %p122 = por %p120, %p121
      %p123 = scmp.ne.s32.totalorder %s115, %s117
      %p124 = scmp.eq.s32.totalorder %s23, 1
      %p125 = por %p123, %p124
      %p126 = scmp.ne.s32.totalorder %s117, %s118
      %p127 = scmp.eq.s32.totalorder %s23, 0
      %p128 = por %p126, %p127
      %p129 = scmp.ne.s32.totalorder %s117, %s118
      %p130 = scmp.eq.s32.totalorder %s24, 1
      %p131 = por %p129, %p130
      %p133 = scmp.ne.s32.totalorder %s118, %s132
      %p134 = scmp.eq.s32.totalorder %s24, 0
      %p135 = por %p133, %p134
      %s136 = ssub.s32 %s18, %s25
      %p137 = scmp.eq.s32.totalorder %s136, 0
      %s139 = sadd.s32 %s138, 1
      %s140 = scalar_select %p137, %s138, %s139
      %p143 = pneg %p137
      %p144 = scmp.eq.s32.totalorder %s18, 1
      %p145 = por %p143, %p144
      %p146 = scmp.ne.s32.totalorder %s138, %s141
      %p147 = scmp.eq.s32.totalorder %s18, 0
      %p148 = por %p146, %p147
      %p149 = scmp.ne.s32.totalorder %s138, %s141
      %p150 = scmp.eq.s32.totalorder %s23, 1
      %p151 = por %p149, %p150
      %p152 = scmp.ne.s32.totalorder %s141, %s142
      %p153 = scmp.eq.s32.totalorder %s23, 0
      %p154 = por %p152, %p153
      %p155 = scmp.ne.s32.totalorder %s141, %s142
      %p156 = scmp.eq.s32.totalorder %s24, 1
      %p157 = por %p155, %p156
      %p159 = scmp.ne.s32.totalorder %s142, %s158
      %p160 = scmp.eq.s32.totalorder %s24, 0
      %p161 = por %p159, %p160
      %p162 = scmp.le.s32.totalorder 1, %s18
      %p163 = scmp.lt.s32.totalorder %s18, 3
      %p164 = pnand %p162, %p163
      %p165 = pneg %p164
      // Predicated region
      $region9: #{tpu_custom_call.1} parent=5 // pred_check
        _
      $region10: #{tpu_custom_call.1} parent=5 // pred_check_branch
        %167 = sbr.rel (%p164) target = $region12
      $region11: #{tpu_custom_call.1} parent=5 // pred_region
        %s168 = ssub.s32 %s18, 1
        // Predicated region
        $region13: #{tpu_custom_call.1} parent=11 // pred_check
          %p169 = pneg %p65
        $region14: #{tpu_custom_call.1} parent=11 // pred_check_branch
          %171 = sbr.rel (%p169) target = $region16
        $region15: #{tpu_custom_call.1} parent=11 // pred_region
          %s173 = ssub.s32 256, 256
          %174 = vsyncadd [#allocation6], %s173
          %s175 = sshll.u32 [#allocation5], 4
          %s176 = int_to_ptr.vmem [resolvable:$true] %s175
          %181 = dma.hbm_to_vmem [thread:$0]  %s1, 256, %s176, [#allocation6], 64, 64, 4
        $region16: #{tpu_custom_call.1} parent=11 // pred_fallthru
          _
        // Predicated region
        $region17: #{tpu_custom_call.1} parent=11 // pred_check
          %p182 = pneg %p86
        $region18: #{tpu_custom_call.1} parent=11 // pred_check_branch
          %184 = sbr.rel (%p182) target = $region20
        $region19: #{tpu_custom_call.1} parent=11 // pred_region
          _
        $region20: #{tpu_custom_call.1} parent=11 // pred_fallthru
          _
        // Predicated region
        $region21: #{tpu_custom_call.1} parent=11 // pred_check
          %p185 = pneg %p107
        $region22: #{tpu_custom_call.1} parent=11 // pred_check_branch
          %187 = sbr.rel (%p185) target = $region24
        $region23: #{tpu_custom_call.1} parent=11 // pred_region
          %s189 = ssub.s32 256, 256
          %190 = vsyncadd [#allocation6], %s189
          %s191 = sshll.u32 [#allocation7], 4
          %s192 = int_to_ptr.vmem [resolvable:$true] %s191
          %197 = dma.hbm_to_vmem [thread:$0]  %s3, 256, %s192, [#allocation6], 64, 64, 4
        $region24: #{tpu_custom_call.1} parent=11 // pred_fallthru
          _
        // Predicated region
        $region25: #{tpu_custom_call.1} parent=11 // pred_check
          %p198 = pneg %p128
        $region26: #{tpu_custom_call.1} parent=11 // pred_check_branch
          %200 = sbr.rel (%p198) target = $region28
        $region27: #{tpu_custom_call.1} parent=11 // pred_region
          _
        $region28: #{tpu_custom_call.1} parent=11 // pred_fallthru
          _
      $region12: #{tpu_custom_call.1} parent=5 // pred_fallthru
        _
      %p201 = scmp.lt.s32.totalorder %s18, 2
      // Predicated region
      $region29: #{tpu_custom_call.1} parent=5 // pred_check
        %p202 = pneg %p201
      $region30: #{tpu_custom_call.1} parent=5 // pred_check_branch
        %204 = sbr.rel (%p202) target = $region32
      $region31: #{tpu_custom_call.1} parent=5 // pred_region
        // Predicated region
        $region33: #{tpu_custom_call.1} parent=31 // pred_check
          %p205 = pneg %p38
        $region34: #{tpu_custom_call.1} parent=31 // pred_check_branch
          %207 = sbr.rel (%p205) target = $region36
        $region35: #{tpu_custom_call.1} parent=31 // pred_region
          %s208 = sand.u32 %s28, 1
          %s209 = scalar_lea.sflag [#allocation3], %s208
          %s210 = sand.u32 %s28, 1
          %s211 = smul.addr %s210, 4
          %s212 = scalar_lea.vmem [#allocation2], %s211
          %s214 = ssub.s32 64, 64
          %215 = vsyncadd %s209, %s214
          %s216 = smul.addr %s18, 64
          %s217 = scalar_lea.hbm %s0, %s216
          %s219 = sshll.u32 %s212, 4
          %s220 = int_to_ptr.vmem [resolvable:$true] %s219
          %222 = dma.hbm_to_vmem [thread:$0]  %s217, 64, %s220, %s209
        $region36: #{tpu_custom_call.1} parent=31 // pred_fallthru
          _
      $region32: #{tpu_custom_call.1} parent=5 // pred_fallthru
        _
      %p223 = scmp.le.s32.totalorder 1, %s18
      %p224 = scmp.lt.s32.totalorder %s18, 3
      %p225 = pnand %p223, %p224
      %p226 = pneg %p225
      // Predicated region
      $region37: #{tpu_custom_call.1} parent=5 // pred_check
        _
      $region38: #{tpu_custom_call.1} parent=5 // pred_check_branch
        %228 = sbr.rel (%p225) target = $region40
      $region39: #{tpu_custom_call.1} parent=5 // pred_region
        %s229 = ssub.s32 %s18, 1
        %s230 = sand.u32 %s31, 1
        %s231 = scalar_lea.sflag [#allocation3], %s230
        %s232 = sand.u32 %s31, 1
        %s233 = smul.addr %s232, 4
        %s234 = scalar_lea.vmem [#allocation2], %s233
        // Predicated region
        $region41: #{tpu_custom_call.1} parent=39 // pred_check
          %p235 = pneg %p44
        $region42: #{tpu_custom_call.1} parent=39 // pred_check_branch
          %237 = sbr.rel (%p235) target = $region44
        $region43: #{tpu_custom_call.1} parent=39 // pred_region
          %238 = dma.done %s231, 64
        $region44: #{tpu_custom_call.1} parent=39 // pred_fallthru
          _
        // Predicated region
        $region45: #{tpu_custom_call.1} parent=39 // pred_check
          %p239 = pneg %p65
        $region46: #{tpu_custom_call.1} parent=39 // pred_check_branch
          %241 = sbr.rel (%p239) target = $region48
        $region47: #{tpu_custom_call.1} parent=39 // pred_region
          %242 = dma.done [#allocation6], 256
        $region48: #{tpu_custom_call.1} parent=39 // pred_fallthru
          _
        // Predicated region
        $region49: #{tpu_custom_call.1} parent=39 // pred_check
          %p243 = pneg %p107
        $region50: #{tpu_custom_call.1} parent=39 // pred_check_branch
          %245 = sbr.rel (%p243) target = $region52
        $region51: #{tpu_custom_call.1} parent=39 // pred_region
          %246 = dma.done [#allocation6], 256
        $region52: #{tpu_custom_call.1} parent=39 // pred_fallthru
          _
        %s247 = sand.u32 %s31, 1
        %s248 = scalar_lea.sflag [#allocation3], %s247
        %s249 = sand.u32 %s31, 1
        %s250 = smul.addr %s249, 4
        %s251 = scalar_lea.vmem [#allocation2], %s250
        %p252 = pneg %p44
        %p253 = pneg %p41
        %p254 = pneg %p65
        %p255 = pneg %p62
        %p256 = pneg %p86
        %p257 = pneg %p83
        %p258 = pneg %p107
        %p259 = pneg %p104
        %p260 = pneg %p128
        %p261 = pneg %p125
        %p262 = pneg %p154
        %p263 = pneg %p151
        %s264 = sand.u32 %s141, 1
        %s265 = scalar_lea.sflag [#allocation4], %s264
        %s266 = sand.u32 %s141, 1
        %s267 = smul.addr %s266, 8
        %s268 = scalar_lea.vmem [#allocation8], %s267
        %v270 = vld [vmem:[%s234] sm:$0xf]
        %v271 = vld [vmem:[#allocation5] sm:$0xf]
        %v272 = vld [vmem:[#allocation5 + $0x4] sm:$0xf]
        %v273 = vld [vmem:[#allocation5 + $0x8] sm:$0xf]
        %v274 = vld [vmem:[#allocation5 + $0xc] sm:$0xf]
        %v275 = vld [vmem:[%s2] sm:$0x1]
        %v277 = vlaneseq
        %v278 = vshrl.u32 %v277, 7
        %v279 = vsub.s32 0, %v278
        %v280 = vrot.slane %v275, %v279
        %v286 = vunpack.c.l.b16 %v271
        %v287 = vunpack.c.l.b16 %v272
        %v288 = vunpack.c.l.b16 %v273
        %v289 = vunpack.c.l.b16 %v274
        %v290 = vpack.c.b16 %v287, %v286
        %v291 = vpack.c.b16 %v289, %v288
        %vm294 = vcmask 261120
        %v296 = vsel %vm294, %v270, 0
        %298 = vmatprep.subr.bf16.mxu0 0
        %299 = vmatpush1.bf16.msra.mxu0 0
        %300 = vmatprep.subr.bf16.mxu0 0
        %301 = vmatpush1.bf16.msra.mxu0 0
        %302 = vmatprep.subr.bf16.mxu0 0
        %303 = vmatpush1.bf16.msra.mxu0 0
        %304 = vmatprep.subr.bf16.mxu0 0
        %305 = vmatpush1.bf16.msra.mxu0 0
        %306 = vmatprep.subr.bf16.mxu0 0
        %307 = vmatpush1.bf16.msra.mxu0 0
        %308 = vmatprep.subr.bf16.mxu0 0
        %309 = vmatpush1.bf16.msra.mxu0 0
        %310 = vmatprep.subr.bf16.mxu0 0
        %311 = vmatpush1.bf16.msra.mxu0 %v291
        %312 = vmatprep.subr.bf16.mxu0 0
        %313 = vmatpush1.bf16.msra.mxu0 %v290
        %314 = vmatprep.subr.bf16.mxu0 0
        %315 = vmatpush2.bf16.msra.mxu0 0
        %316 = vmatprep.subr.bf16.mxu0 0
        %317 = vmatpush2.bf16.msra.mxu0 0
        %318 = vmatprep.subr.bf16.mxu0 0
        %319 = vmatpush2.bf16.msra.mxu0 0
        %320 = vmatprep.subr.bf16.mxu0 0
        %321 = vmatpush2.bf16.msra.mxu0 0
        %322 = vmatprep.subr.bf16.mxu0 0
        %323 = vmatpush2.bf16.msra.mxu0 0
        %324 = vmatprep.subr.bf16.mxu0 0
        %325 = vmatpush2.bf16.msra.mxu0 0
        %326 = vmatprep.subr.bf16.mxu0 0
        %327 = vmatpush2.bf16.msra.mxu0 0
        %328 = vmatprep.subr.bf16.mxu0 0
        %329 = vmatpush2.bf16.msra.mxu0 0
        %330 = vmatprep.mubr.bf16.mxu0 0
        %331 = vmatmul.mubr.bf16.gmra.mxu0 %v296
        %v332 = vpop.f32.mrf.mxu0
        %v333 = vadd.f32 %v280, %v332
        %v334 = vpop.f32.mrf.mxu0
        %v335 = vpop.f32.mrf.mxu0
        %v336 = vpop.f32.mrf.mxu0
        %337 = vdwg.mxu0
        %v338 = vlaneseq
        %v339 = vshrl.u32 %v338, 7
        %v340 = vlaneseq
        %v341 = vand.u32 %v340, 127
        %vm342 = vcmp.le.s32.totalorder %v341, %v339
        %v343 = vmul.f32 %v333, 0.35355338
        %v344 = vpack.c.bf16 %v343, %v343
        %v345 = vpack.c.bf16 %v333, %v333
        %347 = vrot.lane.b32.xlu0 %v344, 96
        %v348 = vpop.permute.xlu0 %347
        %vm349 = vcmask 64512
        %v351 = vsel %vm349, %v348, 0
        %v354 = vsel %vm349, %v345, 0
        %356 = vmatprep.subr.bf16.mxu0 0
        %357 = vmatpush1.bf16.xpose.msra.mxu0 0
        %358 = vmatprep.subr.bf16.mxu0 0
        %359 = vmatpush1.bf16.xpose.msra.mxu0 0
        %360 = vmatprep.subr.bf16.mxu0 0
        %361 = vmatpush1.bf16.xpose.msra.mxu0 0
        %362 = vmatprep.subr.bf16.mxu0 0
        %363 = vmatpush1.bf16.xpose.msra.mxu0 0
        %364 = vmatprep.subr.bf16.mxu0 0
        %365 = vmatpush1.bf16.xpose.msra.mxu0 0
        %366 = vmatprep.subr.bf16.mxu0 0
        %367 = vmatpush1.bf16.xpose.msra.mxu0 0
        %368 = vmatprep.subr.bf16.mxu0 0
        %369 = vmatpush1.bf16.xpose.msra.mxu0 0
        %370 = vmatprep.subr.bf16.mxu0 0
        %371 = vmatpush1.bf16.xpose.msra.mxu0 %v354
        %372 = vmatprep.subr.bf16.mxu0 0
        %373 = vmatpush2.bf16.xpose.msra.mxu0 0
        %374 = vmatprep.subr.bf16.mxu0 0
        %375 = vmatpush2.bf16.xpose.msra.mxu0 0
        %376 = vmatprep.subr.bf16.mxu0 0
        %377 = vmatpush2.bf16.xpose.msra.mxu0 0
        %378 = vmatprep.subr.bf16.mxu0 0
        %379 = vmatpush2.bf16.xpose.msra.mxu0 0
        %380 = vmatprep.subr.bf16.mxu0 0
        %381 = vmatpush2.bf16.xpose.msra.mxu0 0
        %382 = vmatprep.subr.bf16.mxu0 0
        %383 = vmatpush2.bf16.xpose.msra.mxu0 0
        %384 = vmatprep.subr.bf16.mxu0 0
        %385 = vmatpush2.bf16.xpose.msra.mxu0 0
        %386 = vmatprep.subr.bf16.mxu0 0
        %387 = vmatpush2.bf16.xpose.msra.mxu0 0
        %388 = vmatprep.mubr.bf16.mxu0 0
        %389 = vmatmul.mubr.bf16.gmra.mxu0 %v351
        %v390 = vpop.f32.mrf.mxu0
        %v391 = vadd.f32 0.0, %v390
        %v392 = vpop.f32.mrf.mxu0
        %v393 = vpop.f32.mrf.mxu0
        %v394 = vpop.f32.mrf.mxu0
        %395 = vdwg.mxu0
        %v396 = vsel %vm342, %v391, -inf
        %v397 = vsel %vm349, %v396, -inf
        %398 = vmax.xlane.f32.xlu0 %v397
        %v399 = vpop.xlane.xlu0 %398
        %v400 = vsub.f32 %v396, %v399
        %v401 = vmul.f32 %v400, 1.442695
        %v402 = vpow.pop %v401
        %v403 = vsel %vm349, %v402, 0.0
        %404 = vadd.xlane.f32.xlu0 %v403
        %v405 = vpop.xlane.xlu0 %404
        %v406 = vrcp.pop %v405
        %v407 = vmul.f32 %v402, %v406
        %v408 = vpack.c.bf16 %v407, %v407
        %410 = vrot.lane.b32.xlu0 %v345, 64
        %v411 = vpop.permute.xlu0 %410
        %v413 = vsel %vm349, %v408, 0
        %vm415 = vcmask 1043456
        %v417 = vsel %vm415, %v411, 0
        %419 = vmatprep.subr.bf16.mxu0 0
        %420 = vmatpush1.bf16.msra.mxu0 0
        %421 = vmatprep.subr.bf16.mxu0 0
        %422 = vmatpush1.bf16.msra.mxu0 0
        %423 = vmatprep.subr.bf16.mxu0 0
        %424 = vmatpush1.bf16.msra.mxu0 0
        %425 = vmatprep.subr.bf16.mxu0 0
        %426 = vmatpush1.bf16.msra.mxu0 0
        %427 = vmatprep.subr.bf16.mxu0 0
        %428 = vmatpush1.bf16.msra.mxu0 0
        %429 = vmatprep.subr.bf16.mxu0 0
        %430 = vmatpush1.bf16.msra.mxu0 0
        %431 = vmatprep.subr.bf16.mxu0 0
        %432 = vmatpush1.bf16.msra.mxu0 0
        %433 = vmatprep.subr.bf16.mxu0 0
        %434 = vmatpush1.bf16.msra.mxu0 %v417
        %435 = vmatprep.subr.bf16.mxu0 0
        %436 = vmatpush2.bf16.msra.mxu0 0
        %437 = vmatprep.subr.bf16.mxu0 0
        %438 = vmatpush2.bf16.msra.mxu0 0
        %439 = vmatprep.subr.bf16.mxu0 0
        %440 = vmatpush2.bf16.msra.mxu0 0
        %441 = vmatprep.subr.bf16.mxu0 0
        %442 = vmatpush2.bf16.msra.mxu0 0
        %443 = vmatprep.subr.bf16.mxu0 0
        %444 = vmatpush2.bf16.msra.mxu0 0
        %445 = vmatprep.subr.bf16.mxu0 0
        %446 = vmatpush2.bf16.msra.mxu0 0
        %447 = vmatprep.subr.bf16.mxu0 0
        %448 = vmatpush2.bf16.msra.mxu0 0
        %449 = vmatprep.subr.bf16.mxu0 0
        %450 = vmatpush2.bf16.msra.mxu0 0
        %451 = vmatprep.mubr.bf16.mxu0 0
        %452 = vmatmul.mubr.bf16.gmra.mxu0 %v413
        %v453 = vpop.f32.mrf.mxu0
        %v454 = vadd.f32 0.0, %v453
        %v455 = vpop.f32.mrf.mxu0
        %v456 = vpop.f32.mrf.mxu0
        %v457 = vpop.f32.mrf.mxu0
        %458 = vdwg.mxu0
        %459 = vrot.lane.b32.xlu0 %v344, 88
        %v460 = vpop.permute.xlu0 %459
        %461 = vrot.lane.b32.xlu0 %v345, 120
        %v462 = vpop.permute.xlu0 %461
        %v464 = vsel %vm349, %v460, 0
        %v467 = vsel %vm349, %v462, 0
        %469 = vmatprep.subr.bf16.mxu0 0
        %470 = vmatpush1.bf16.xpose.msra.mxu0 0
        %471 = vmatprep.subr.bf16.mxu0 0
        %472 = vmatpush1.bf16.xpose.msra.mxu0 0
        %473 = vmatprep.subr.bf16.mxu0 0
        %474 = vmatpush1.bf16.xpose.msra.mxu0 0
        %475 = vmatprep.subr.bf16.mxu0 0
        %476 = vmatpush1.bf16.xpose.msra.mxu0 0
        %477 = vmatprep.subr.bf16.mxu0 0
        %478 = vmatpush1.bf16.xpose.msra.mxu0 0
        %479 = vmatprep.subr.bf16.mxu0 0
        %480 = vmatpush1.bf16.xpose.msra.mxu0 0
        %481 = vmatprep.subr.bf16.mxu0 0
        %482 = vmatpush1.bf16.xpose.msra.mxu0 0
        %483 = vmatprep.subr.bf16.mxu0 0
        %484 = vmatpush1.bf16.xpose.msra.mxu0 %v467
        %485 = vmatprep.subr.bf16.mxu0 0
        %486 = vmatpush2.bf16.xpose.msra.mxu0 0
        %487 = vmatprep.subr.bf16.mxu0 0
        %488 = vmatpush2.bf16.xpose.msra.mxu0 0
        %489 = vmatprep.subr.bf16.mxu0 0
        %490 = vmatpush2.bf16.xpose.msra.mxu0 0
        %491 = vmatprep.subr.bf16.mxu0 0
        %492 = vmatpush2.bf16.xpose.msra.mxu0 0
        %493 = vmatprep.subr.bf16.mxu0 0
        %494 = vmatpush2.bf16.xpose.msra.mxu0 0
        %495 = vmatprep.subr.bf16.mxu0 0
        %496 = vmatpush2.bf16.xpose.msra.mxu0 0
        %497 = vmatprep.subr.bf16.mxu0 0
        %498 = vmatpush2.bf16.xpose.msra.mxu0 0
        %499 = vmatprep.subr.bf16.mxu0 0
        %500 = vmatpush2.bf16.xpose.msra.mxu0 0
        %501 = vmatprep.mubr.bf16.mxu0 0
        %502 = vmatmul.mubr.bf16.gmra.mxu0 %v464
        %v503 = vpop.f32.mrf.mxu0
        %v504 = vadd.f32 0.0, %v503
        %v505 = vpop.f32.mrf.mxu0
        %v506 = vpop.f32.mrf.mxu0
        %v507 = vpop.f32.mrf.mxu0
        %508 = vdwg.mxu0
        %v509 = vsel %vm342, %v504, -inf
        %v510 = vsel %vm349, %v509, -inf
        %511 = vmax.xlane.f32.xlu0 %v510
        %v512 = vpop.xlane.xlu0 %511
        %v513 = vsub.f32 %v509, %v512
        %v514 = vmul.f32 %v513, 1.442695
        %v515 = vpow.pop %v514
        %v516 = vsel %vm349, %v515, 0.0
        %517 = vadd.xlane.f32.xlu0 %v516
        %v518 = vpop.xlane.xlu0 %517
        %v519 = vrcp.pop %v518
        %v520 = vmul.f32 %v515, %v519
        %v521 = vpack.c.bf16 %v520, %v520
        %522 = vrot.lane.b32.xlu0 %v345, 56
        %v523 = vpop.permute.xlu0 %522
        %v525 = vsel %vm349, %v521, 0
        %v528 = vsel %vm415, %v523, 0
        %530 = vmatprep.subr.bf16.mxu0 0
        %531 = vmatpush1.bf16.msra.mxu0 0
        %532 = vmatprep.subr.bf16.mxu0 0
        %533 = vmatpush1.bf16.msra.mxu0 0
        %534 = vmatprep.subr.bf16.mxu0 0
        %535 = vmatpush1.bf16.msra.mxu0 0
        %536 = vmatprep.subr.bf16.mxu0 0
        %537 = vmatpush1.bf16.msra.mxu0 0
        %538 = vmatprep.subr.bf16.mxu0 0
        %539 = vmatpush1.bf16.msra.mxu0 0
        %540 = vmatprep.subr.bf16.mxu0 0
        %541 = vmatpush1.bf16.msra.mxu0 0
        %542 = vmatprep.subr.bf16.mxu0 0
        %543 = vmatpush1.bf16.msra.mxu0 0
        %544 = vmatprep.subr.bf16.mxu0 0
        %545 = vmatpush1.bf16.msra.mxu0 %v528
        %546 = vmatprep.subr.bf16.mxu0 0
        %547 = vmatpush2.bf16.msra.mxu0 0
        %548 = vmatprep.subr.bf16.mxu0 0
        %549 = vmatpush2.bf16.msra.mxu0 0
        %550 = vmatprep.subr.bf16.mxu0 0
        %551 = vmatpush2.bf16.msra.mxu0 0
        %552 = vmatprep.subr.bf16.mxu0 0
        %553 = vmatpush2.bf16.msra.mxu0 0
        %554 = vmatprep.subr.bf16.mxu0 0
        %555 = vmatpush2.bf16.msra.mxu0 0
        %556 = vmatprep.subr.bf16.mxu0 0
        %557 = vmatpush2.bf16.msra.mxu0 0
        %558 = vmatprep.subr.bf16.mxu0 0
        %559 = vmatpush2.bf16.msra.mxu0 0
        %560 = vmatprep.subr.bf16.mxu0 0
        %561 = vmatpush2.bf16.msra.mxu0 0
        %562 = vmatprep.mubr.bf16.mxu0 0
        %563 = vmatmul.mubr.bf16.gmra.mxu0 %v525
        %v564 = vpop.f32.mrf.mxu0
        %v565 = vadd.f32 0.0, %v564
        %v566 = vpop.f32.mrf.mxu0
        %v567 = vpop.f32.mrf.mxu0
        %v568 = vpop.f32.mrf.mxu0
        %569 = vdwg.mxu0
        %570 = vrot.lane.b32.xlu0 %v344, 80
        %v571 = vpop.permute.xlu0 %570
        %572 = vrot.lane.b32.xlu0 %v345, 112
        %v573 = vpop.permute.xlu0 %572
        %v575 = vsel %vm349, %v571, 0
        %v578 = vsel %vm349, %v573, 0
        %580 = vmatprep.subr.bf16.mxu0 0
        %581 = vmatpush1.bf16.xpose.msra.mxu0 0
        %582 = vmatprep.subr.bf16.mxu0 0
        %583 = vmatpush1.bf16.xpose.msra.mxu0 0
        %584 = vmatprep.subr.bf16.mxu0 0
        %585 = vmatpush1.bf16.xpose.msra.mxu0 0
        %586 = vmatprep.subr.bf16.mxu0 0
        %587 = vmatpush1.bf16.xpose.msra.mxu0 0
        %588 = vmatprep.subr.bf16.mxu0 0
        %589 = vmatpush1.bf16.xpose.msra.mxu0 0
        %590 = vmatprep.subr.bf16.mxu0 0
        %591 = vmatpush1.bf16.xpose.msra.mxu0 0
        %592 = vmatprep.subr.bf16.mxu0 0
        %593 = vmatpush1.bf16.xpose.msra.mxu0 0
        %594 = vmatprep.subr.bf16.mxu0 0
        %595 = vmatpush1.bf16.xpose.msra.mxu0 %v578
        %596 = vmatprep.subr.bf16.mxu0 0
        %597 = vmatpush2.bf16.xpose.msra.mxu0 0
        %598 = vmatprep.subr.bf16.mxu0 0
        %599 = vmatpush2.bf16.xpose.msra.mxu0 0
        %600 = vmatprep.subr.bf16.mxu0 0
        %601 = vmatpush2.bf16.xpose.msra.mxu0 0
        %602 = vmatprep.subr.bf16.mxu0 0
        %603 = vmatpush2.bf16.xpose.msra.mxu0 0
        %604 = vmatprep.subr.bf16.mxu0 0
        %605 = vmatpush2.bf16.xpose.msra.mxu0 0
        %606 = vmatprep.subr.bf16.mxu0 0
        %607 = vmatpush2.bf16.xpose.msra.mxu0 0
        %608 = vmatprep.subr.bf16.mxu0 0
        %609 = vmatpush2.bf16.xpose.msra.mxu0 0
        %610 = vmatprep.subr.bf16.mxu0 0
        %611 = vmatpush2.bf16.xpose.msra.mxu0 0
        %612 = vmatprep.mubr.bf16.mxu0 0
        %613 = vmatmul.mubr.bf16.gmra.mxu0 %v575
        %v614 = vpop.f32.mrf.mxu0
        %v615 = vadd.f32 0.0, %v614
        %v616 = vpop.f32.mrf.mxu0
        %v617 = vpop.f32.mrf.mxu0
        %v618 = vpop.f32.mrf.mxu0
        %619 = vdwg.mxu0
        %v620 = vsel %vm342, %v615, -inf
        %v621 = vsel %vm349, %v620, -inf
        %622 = vmax.xlane.f32.xlu0 %v621
        %v623 = vpop.xlane.xlu0 %622
        %v624 = vsub.f32 %v620, %v623
        %v625 = vmul.f32 %v624, 1.442695
        %v626 = vpow.pop %v625
        %v627 = vsel %vm349, %v626, 0.0
        %628 = vadd.xlane.f32.xlu0 %v627
        %v629 = vpop.xlane.xlu0 %628
        %v630 = vrcp.pop %v629
        %v631 = vmul.f32 %v626, %v630
        %v632 = vpack.c.bf16 %v631, %v631
        %633 = vrot.lane.b32.xlu0 %v345, 48
        %v634 = vpop.permute.xlu0 %633
        %v636 = vsel %vm349, %v632, 0
        %v639 = vsel %vm415, %v634, 0
        %641 = vmatprep.subr.bf16.mxu0 0
        %642 = vmatpush1.bf16.msra.mxu0 0
        %643 = vmatprep.subr.bf16.mxu0 0
        %644 = vmatpush1.bf16.msra.mxu0 0
        %645 = vmatprep.subr.bf16.mxu0 0
        %646 = vmatpush1.bf16.msra.mxu0 0
        %647 = vmatprep.subr.bf16.mxu0 0
        %648 = vmatpush1.bf16.msra.mxu0 0
        %649 = vmatprep.subr.bf16.mxu0 0
        %650 = vmatpush1.bf16.msra.mxu0 0
        %651 = vmatprep.subr.bf16.mxu0 0
        %652 = vmatpush1.bf16.msra.mxu0 0
        %653 = vmatprep.subr.bf16.mxu0 0
        %654 = vmatpush1.bf16.msra.mxu0 0
        %655 = vmatprep.subr.bf16.mxu0 0
        %656 = vmatpush1.bf16.msra.mxu0 %v639
        %657 = vmatprep.subr.bf16.mxu0 0
        %658 = vmatpush2.bf16.msra.mxu0 0
        %659 = vmatprep.subr.bf16.mxu0 0
        %660 = vmatpush2.bf16.msra.mxu0 0
        %661 = vmatprep.subr.bf16.mxu0 0
        %662 = vmatpush2.bf16.msra.mxu0 0
        %663 = vmatprep.subr.bf16.mxu0 0
        %664 = vmatpush2.bf16.msra.mxu0 0
        %665 = vmatprep.subr.bf16.mxu0 0
        %666 = vmatpush2.bf16.msra.mxu0 0
        %667 = vmatprep.subr.bf16.mxu0 0
        %668 = vmatpush2.bf16.msra.mxu0 0
        %669 = vmatprep.subr.bf16.mxu0 0
        %670 = vmatpush2.bf16.msra.mxu0 0
        %671 = vmatprep.subr.bf16.mxu0 0
        %672 = vmatpush2.bf16.msra.mxu0 0
        %673 = vmatprep.mubr.bf16.mxu0 0
        %674 = vmatmul.mubr.bf16.gmra.mxu0 %v636
        %v675 = vpop.f32.mrf.mxu0
        %v676 = vadd.f32 0.0, %v675
        %v677 = vpop.f32.mrf.mxu0
        %v678 = vpop.f32.mrf.mxu0
        %v679 = vpop.f32.mrf.mxu0
        %680 = vdwg.mxu0
        %681 = vrot.lane.b32.xlu0 %v344, 72
        %v682 = vpop.permute.xlu0 %681
        %683 = vrot.lane.b32.xlu0 %v345, 104
        %v684 = vpop.permute.xlu0 %683
        %v686 = vsel %vm349, %v682, 0
        %v689 = vsel %vm349, %v684, 0
        %691 = vmatprep.subr.bf16.mxu0 0
        %692 = vmatpush1.bf16.xpose.msra.mxu0 0
        %693 = vmatprep.subr.bf16.mxu0 0
        %694 = vmatpush1.bf16.xpose.msra.mxu0 0
        %695 = vmatprep.subr.bf16.mxu0 0
        %696 = vmatpush1.bf16.xpose.msra.mxu0 0
        %697 = vmatprep.subr.bf16.mxu0 0
        %698 = vmatpush1.bf16.xpose.msra.mxu0 0
        %699 = vmatprep.subr.bf16.mxu0 0
        %700 = vmatpush1.bf16.xpose.msra.mxu0 0
        %701 = vmatprep.subr.bf16.mxu0 0
        %702 = vmatpush1.bf16.xpose.msra.mxu0 0
        %703 = vmatprep.subr.bf16.mxu0 0
        %704 = vmatpush1.bf16.xpose.msra.mxu0 0
        %705 = vmatprep.subr.bf16.mxu0 0
        %706 = vmatpush1.bf16.xpose.msra.mxu0 %v689
        %707 = vmatprep.subr.bf16.mxu0 0
        %708 = vmatpush2.bf16.xpose.msra.mxu0 0
        %709 = vmatprep.subr.bf16.mxu0 0
        %710 = vmatpush2.bf16.xpose.msra.mxu0 0
        %711 = vmatprep.subr.bf16.mxu0 0
        %712 = vmatpush2.bf16.xpose.msra.mxu0 0
        %713 = vmatprep.subr.bf16.mxu0 0
        %714 = vmatpush2.bf16.xpose.msra.mxu0 0
        %715 = vmatprep.subr.bf16.mxu0 0
        %716 = vmatpush2.bf16.xpose.msra.mxu0 0
        %717 = vmatprep.subr.bf16.mxu0 0
        %718 = vmatpush2.bf16.xpose.msra.mxu0 0
        %719 = vmatprep.subr.bf16.mxu0 0
        %720 = vmatpush2.bf16.xpose.msra.mxu0 0
        %721 = vmatprep.subr.bf16.mxu0 0
        %722 = vmatpush2.bf16.xpose.msra.mxu0 0
        %723 = vmatprep.mubr.bf16.mxu0 0
        %724 = vmatmul.mubr.bf16.gmra.mxu0 %v686
        %v725 = vpop.f32.mrf.mxu0
        %v726 = vadd.f32 0.0, %v725
        %v727 = vpop.f32.mrf.mxu0
        %v728 = vpop.f32.mrf.mxu0
        %v729 = vpop.f32.mrf.mxu0
        %730 = vdwg.mxu0
        %v731 = vsel %vm342, %v726, -inf
        %v732 = vsel %vm349, %v731, -inf
        %733 = vmax.xlane.f32.xlu0 %v732
        %v734 = vpop.xlane.xlu0 %733
        %v735 = vsub.f32 %v731, %v734
        %v736 = vmul.f32 %v735, 1.442695
        %v737 = vpow.pop %v736
        %v738 = vsel %vm349, %v737, 0.0
        %739 = vadd.xlane.f32.xlu0 %v738
        %v740 = vpop.xlane.xlu0 %739
        %v741 = vrcp.pop %v740
        %v742 = vmul.f32 %v737, %v741
        %v743 = vpack.c.bf16 %v742, %v742
        %744 = vrot.lane.b32.xlu0 %v345, 40
        %v745 = vpop.permute.xlu0 %744
        %v747 = vsel %vm349, %v743, 0
        %v750 = vsel %vm415, %v745, 0
        %752 = vmatprep.subr.bf16.mxu0 0
        %753 = vmatpush1.bf16.msra.mxu0 0
        %754 = vmatprep.subr.bf16.mxu0 0
        %755 = vmatpush1.bf16.msra.mxu0 0
        %756 = vmatprep.subr.bf16.mxu0 0
        %757 = vmatpush1.bf16.msra.mxu0 0
        %758 = vmatprep.subr.bf16.mxu0 0
        %759 = vmatpush1.bf16.msra.mxu0 0
        %760 = vmatprep.subr.bf16.mxu0 0
        %761 = vmatpush1.bf16.msra.mxu0 0
        %762 = vmatprep.subr.bf16.mxu0 0
        %763 = vmatpush1.bf16.msra.mxu0 0
        %764 = vmatprep.subr.bf16.mxu0 0
        %765 = vmatpush1.bf16.msra.mxu0 0
        %766 = vmatprep.subr.bf16.mxu0 0
        %767 = vmatpush1.bf16.msra.mxu0 %v750
        %768 = vmatprep.subr.bf16.mxu0 0
        %769 = vmatpush2.bf16.msra.mxu0 0
        %770 = vmatprep.subr.bf16.mxu0 0
        %771 = vmatpush2.bf16.msra.mxu0 0
        %772 = vmatprep.subr.bf16.mxu0 0
        %773 = vmatpush2.bf16.msra.mxu0 0
        %774 = vmatprep.subr.bf16.mxu0 0
        %775 = vmatpush2.bf16.msra.mxu0 0
        %776 = vmatprep.subr.bf16.mxu0 0
        %777 = vmatpush2.bf16.msra.mxu0 0
        %778 = vmatprep.subr.bf16.mxu0 0
        %779 = vmatpush2.bf16.msra.mxu0 0
        %780 = vmatprep.subr.bf16.mxu0 0
        %781 = vmatpush2.bf16.msra.mxu0 0
        %782 = vmatprep.subr.bf16.mxu0 0
        %783 = vmatpush2.bf16.msra.mxu0 0
        %784 = vmatprep.mubr.bf16.mxu0 0
        %785 = vmatmul.mubr.bf16.gmra.mxu0 %v747
        %v786 = vpop.f32.mrf.mxu0
        %v787 = vadd.f32 0.0, %v786
        %v788 = vpop.f32.mrf.mxu0
        %v789 = vpop.f32.mrf.mxu0
        %v790 = vpop.f32.mrf.mxu0
        %791 = vdwg.mxu0
        %793 = vrot.lane.b32.xlu0 %v565, 8
        %v794 = vpop.permute.xlu0 %793
        %797 = vrot.lane.b32.xlu0 %v676, 16
        %v798 = vpop.permute.xlu0 %797
        %801 = vrot.lane.b32.xlu0 %v787, 24
        %v802 = vpop.permute.xlu0 %801
        %v804 = vsel %vm349, %v454, %v794
        %vm805 = vcmask 130048
        %v806 = vsel %vm805, %v804, %v798
        %vm807 = vcmask 195584
        %v808 = vsel %vm807, %v806, %v802
        %v809 = vpack.c.bf16 %v808, %v808
        %v810 = vld [vmem:[#allocation7] sm:$0xf]
        %v811 = vld [vmem:[#allocation7 + $0x4] sm:$0xf]
        %v812 = vld [vmem:[#allocation7 + $0x8] sm:$0xf]
        %v813 = vld [vmem:[#allocation7 + $0xc] sm:$0xf]
        %v814 = vld [vmem:[%s4] sm:$0x1]
        %v816 = vlaneseq
        %v817 = vshrl.u32 %v816, 7
        %v818 = vsub.s32 0, %v817
        %v819 = vrot.slane %v814, %v818
        %v825 = vunpack.c.l.b16 %v810
        %v826 = vunpack.c.l.b16 %v811
        %v827 = vunpack.c.l.b16 %v812
        %v828 = vunpack.c.l.b16 %v813
        %v829 = vpack.c.b16 %v826, %v825
        %v830 = vpack.c.b16 %v828, %v827
        %v834 = vsel %vm294, %v809, 0
        %836 = vmatprep.subr.bf16.mxu0 0
        %837 = vmatpush1.bf16.msra.mxu0 0
        %838 = vmatprep.subr.bf16.mxu0 0
        %839 = vmatpush1.bf16.msra.mxu0 0
        %840 = vmatprep.subr.bf16.mxu0 0
        %841 = vmatpush1.bf16.msra.mxu0 0
        %842 = vmatprep.subr.bf16.mxu0 0
        %843 = vmatpush1.bf16.msra.mxu0 0
        %844 = vmatprep.subr.bf16.mxu0 0
        %845 = vmatpush1.bf16.msra.mxu0 0
        %846 = vmatprep.subr.bf16.mxu0 0
        %847 = vmatpush1.bf16.msra.mxu0 0
        %848 = vmatprep.subr.bf16.mxu0 0
        %849 = vmatpush1.bf16.msra.mxu0 %v830
        %850 = vmatprep.subr.bf16.mxu0 0
        %851 = vmatpush1.bf16.msra.mxu0 %v829
        %852 = vmatprep.subr.bf16.mxu0 0
        %853 = vmatpush2.bf16.msra.mxu0 0
        %854 = vmatprep.subr.bf16.mxu0 0
        %855 = vmatpush2.bf16.msra.mxu0 0
        %856 = vmatprep.subr.bf16.mxu0 0
        %857 = vmatpush2.bf16.msra.mxu0 0
        %858 = vmatprep.subr.bf16.mxu0 0
        %859 = vmatpush2.bf16.msra.mxu0 0
        %860 = vmatprep.subr.bf16.mxu0 0
        %861 = vmatpush2.bf16.msra.mxu0 0
        %862 = vmatprep.subr.bf16.mxu0 0
        %863 = vmatpush2.bf16.msra.mxu0 0
        %864 = vmatprep.subr.bf16.mxu0 0
        %865 = vmatpush2.bf16.msra.mxu0 0
        %866 = vmatprep.subr.bf16.mxu0 0
        %867 = vmatpush2.bf16.msra.mxu0 0
        %868 = vmatprep.mubr.bf16.mxu0 0
        %869 = vmatmul.mubr.bf16.gmra.mxu0 %v834
        %v870 = vpop.f32.mrf.mxu0
        %v871 = vadd.f32 %v819, %v870
        %v872 = vpop.f32.mrf.mxu0
        %v873 = vpop.f32.mrf.mxu0
        %v874 = vpop.f32.mrf.mxu0
        %875 = vdwg.mxu0
        %876 = vst [vmem:[%s268] sm:$0xff] %v871
        %s877 = sand.u32 %s141, 1
        %s878 = scalar_lea.sflag [#allocation4], %s877
        %s879 = sand.u32 %s141, 1
        %s880 = smul.addr %s879, 8
        %s881 = scalar_lea.vmem [#allocation8], %s880
        // Predicated region
        $region53: #{tpu_custom_call.1} parent=39 // pred_check
          %p882 = pneg %p151
        $region54: #{tpu_custom_call.1} parent=39 // pred_check_branch
          %884 = sbr.rel (%p882) target = $region56
        $region55: #{tpu_custom_call.1} parent=39 // pred_region
          %s886 = ssub.s32 128, 128
          %887 = vsyncadd %s878, %s886
          %s888 = smul.addr %s23, 128
          %s889 = scalar_lea.hbm %s5, %s888
          %s891 = sshll.u32 %s881, 4
          %s892 = int_to_ptr.vmem [resolvable:$true] %s891
          %894 = dma.vmem_to_hbm [thread:$0]  %s892, 128, %s889, %s878
        $region56: #{tpu_custom_call.1} parent=39 // pred_fallthru
          _
      $region40: #{tpu_custom_call.1} parent=5 // pred_fallthru
        _
      %p895 = scmp.le.s32.totalorder 2, %s18
      // Predicated region
      $region57: #{tpu_custom_call.1} parent=5 // pred_check
        %p896 = pneg %p895
      $region58: #{tpu_custom_call.1} parent=5 // pred_check_branch
        %898 = sbr.rel (%p896) target = $region60
      $region59: #{tpu_custom_call.1} parent=5 // pred_region
        %s899 = ssub.s32 %s18, 2
        // Predicated region
        $region61: #{tpu_custom_call.1} parent=59 // pred_check
          %p900 = pneg %p157
        $region62: #{tpu_custom_call.1} parent=59 // pred_check_branch
          %902 = sbr.rel (%p900) target = $region64
        $region63: #{tpu_custom_call.1} parent=59 // pred_region
          %s903 = sand.u32 %s142, 1
          %s904 = scalar_lea.sflag [#allocation4], %s903
          %s905 = sand.u32 %s142, 1
          %s906 = smul.addr %s905, 8
          %s907 = scalar_lea.vmem [#allocation8], %s906
          %908 = dma.done %s904, 128
        $region64: #{tpu_custom_call.1} parent=59 // pred_fallthru
          _
      $region60: #{tpu_custom_call.1} parent=5 // pred_fallthru
        _
    $region6: #{tpu_custom_call.1} parent=1 // loop_footer
      %s22 = sadd.s32 1, %s18
    $region7: #{tpu_custom_call.1} parent=1 // loop_footer_branch
      %17 = sbr.rel target = $region3
    $region8: #{tpu_custom_call.1} parent=1 // loop_exit
      _
    %909 = vsyncpa [#allocation3], 1
    %s910 = scalar_lea.sflag [#allocation3], 1
    %911 = vsyncpa %s910, 1
    %912 = vsyncpa [#allocation6], 1
    %913 = vsyncpa [#allocation4], 1
    %s914 = scalar_lea.sflag [#allocation4], 1
    %915 = vsyncpa %s914, 1

</llo_original>
